<compile_context>
chip_gen: v5e
topology: v5e:2x2
jax: 0.10.0
libtpu: 0.0.40
codegen_flags: <defaults>
</compile_context>

<pallas_src>
import jax
import jax.numpy as jnp
from jax import lax
from jax.experimental import pallas as pl
from jax.experimental.pallas import tpu as pltpu


def _round_up(a, b):
    return (a + b - 1) // b * b


def _cdiv(a, b):
    return (a + b - 1) // b


def _tpu_vmem_bytes():
    try:
        return int(pltpu.get_tpu_info().vmem_capacity_bytes)
    except Exception:
        return 64 << 20          # v7x-safe fallback


def _tpu_num_cores():
    try:
        info = pltpu.get_tpu_info()
        for attr in ("num_tensorcores", "tensorcore_count", "num_cores", "core_count"):
            v = getattr(info, attr, None)
            if isinstance(v, int) and v >= 1:
                return min(v, 2)
    except Exception:
        pass
    return 1


# ----------------------------------------------------------------------------
# Kernel A: BN batch statistics from S = sum(x) and G = X X^T, x read natively (NCHW).
#   grid = (n_par "parallel", N, spatial tiles); accumulate in VMEM scratch, flush once.
# ----------------------------------------------------------------------------
def _stats_kernel(x_ref, s_ref, g_ref, s_acc, g_acc):
    n = pl.program_id(1)
    t = pl.program_id(2)

    @pl.when(jnp.logical_and(n == 0, t == 0))
    def _():
        s_acc[...] = jnp.zeros_like(s_acc)
        g_acc[...] = jnp.zeros_like(g_acc)

    xb = x_ref[0]                                        # (Cin, Lt) native NCHW slab
    s_acc[...] += jnp.sum(xb, axis=1, keepdims=True)     # (Cin, 1)
    g_acc[...] += lax.dot_general(                       # (Cin, Cin) Gram, contract lanes
        xb, xb, (((1,), (1,)), ((), ())), preferred_element_type=jnp.float32)

    @pl.when(jnp.logical_and(n == pl.num_programs(1) - 1, t == pl.num_programs(2) - 1))
    def _():
        s_ref[0] = s_acc[...]
        g_ref[0] = g_acc[...]


# ----------------------------------------------------------------------------
# Kernel B: y = x_rows @ w4 (scale-folded, w-packed, NHWC-ordered columns) + bias, ReLU.
# Output reshapes for free to (N, 2H, 2W, Cout); only z is written to HBM.
# ----------------------------------------------------------------------------
def _convt_bn_relu_kernel(x_ref, w_ref, b_ref, o_ref):
    y = jnp.dot(x_ref[...], w_ref[...], preferred_element_type=jnp.float32)
    o_ref[...] = jnp.maximum(y + b_ref[...], 0.0)


def upsampler_forward(x, weight, gamma, beta, eps=1e-5):
    """x: [N, Cin, H, W] float32 (NCHW).  weight: [Cin, Cout, 2, 2] (PyTorch ConvT layout)."""
    N, Cin, H, W = x.shape
    Cout = weight.shape[1]
    M = N * H * W                       # input spatial positions (each emits one 2x2 patch)
    NC = 2 * 2 * W * Cout               # kernel-B output columns: (kh, 2w+kw, cout)
    K = W * Cin                         # kernel-B contraction: (w, cin)

    x = x.astype(jnp.float32)
    weight = weight.astype(jnp.float32)
    gamma = gamma.astype(jnp.float32)
    beta = beta.astype(jnp.float32)

    vmem_cap = _tpu_vmem_bytes()
    vmem_limit = min(int(vmem_cap * 0.7), 96 << 20)

    # --------------------------- kernel A: stats (native NCHW read, no y matmul) ----------
    n_cores = _tpu_num_cores()          # 2 on v7x, else 1
    x_nc = x.reshape(N, Cin, H * W)     # free reshape

    budget_a = 8 << 20                  # per-block budget for the stats pass (double-buffered)
    hb = H                              # full-extent fallback is always layout-legal
    for cand in range(H, 0, -1):
        if H % cand:
            continue
        legal = (cand == H) or ((cand * W) % 128 == 0)
        fits = _round_up(Cin, 8) * cand * W * 4 * 2 <= budget_a
        if legal and fits:
            hb = cand
            break
    T = H // hb                         # spatial tiles per image
    n_par = n_cores if (T % n_cores == 0) else 1
    t_in = T // n_par

    s_out, g_out = pl.pallas_call(
        _stats_kernel,
        out_shape=(
            jax.ShapeDtypeStruct((n_par, Cin, 1), jnp.float32),
            jax.ShapeDtypeStruct((n_par, Cin, Cin), jnp.float32),
        ),
        grid_spec=pltpu.PrefetchScalarGridSpec(
            num_scalar_prefetch=0,
            grid=(n_par, N, t_in),
            in_specs=[
                pl.BlockSpec((1, Cin, hb * W),
                             lambda c, n, t, ti=t_in: (n, 0, c * ti + t)),
            ],
            out_specs=[
                pl.BlockSpec((1, Cin, 1), lambda c, n, t: (c, 0, 0)),
                pl.BlockSpec((1, Cin, Cin), lambda c, n, t: (c, 0, 0)),
            ],
            scratch_shapes=[
                pltpu.VMEM((Cin, 1), jnp.float32),
                pltpu.VMEM((Cin, Cin), jnp.float32),
            ],
        ),
        compiler_params=pltpu.CompilerParams(
            dimension_semantics=("parallel", "arbitrary", "arbitrary"),
            vmem_limit_bytes=vmem_limit,
        ),
    )(x_nc)

    # --------------------------- glue: fold stats into BN scale / bias --------------------
    S = s_out.sum(axis=0)[:, 0]                         # (Cin,)
    G = g_out.sum(axis=0)                               # (Cin, Cin)
    wr = weight.reshape(Cin, Cout * 4)                  # columns (cout, kh, kw)
    fM = jnp.float32(M)
    col_mean = (S @ wr) / fM                            # per-(cout,kh,kw) column mean
    Gc = G - jnp.outer(S, S) / fM                       # centered Gram (well-conditioned)
    css = jnp.sum(wr * (Gc @ wr), axis=0)               # per-column centered sum-of-squares
    cm = col_mean.reshape(Cout, 4)
    ch_mean = cm.mean(axis=1)
    dev = cm - ch_mean[:, None]
    var = (css.reshape(Cout, 4).sum(axis=1) + fM * jnp.sum(dev * dev, axis=1)) / (4.0 * fM)
    var = jnp.maximum(var, 0.0)                         # biased variance (train-mode BN)
    scale_c = gamma / jnp.sqrt(var + eps)
    bias_c = beta - ch_mean * scale_c

    # ------------- packed, scale-folded weight: rows (w, cin), cols (kh, 2w+kw, cout) -----
    ws = weight * scale_c[None, :, None, None]                     # BN scale folded in
    base = jnp.transpose(ws, (0, 2, 3, 1))                         # (Cin, kh, kw, Cout)
    eye_w = jnp.eye(W, dtype=jnp.float32)
    w4 = (eye_w[:, None, None, :, None, None] *
          base[None, :, :, None, :, :]).reshape(W * Cin, NC)       # (K, NC)
    bias_cols = jnp.tile(bias_c, 2 * 2 * W).reshape(1, NC)

    # --------------------------- kernel B: matmul + bias + ReLU, NHWC-contiguous out ------
    # one small XLA transpose of x on the way in (x is the small tensor)
    x_rows = jnp.transpose(x, (0, 2, 3, 1)).reshape(N * H, W * Cin)

    n_rows = N * H
    k_pad = _round_up(K, 128)                            # lane padding of the x block in VMEM
    nc_pad = _round_up(NC, 128)
    w4_bytes = _round_up(K, 8) * nc_pad * 4
    tile_budget = max(1 << 20, vmem_limit - 2 * w4_bytes - (2 << 20))
    per_row = (k_pad + nc_pad) * 4 * 2                   # double-buffered in + out, f32
    tr = max(8, min(tile_budget // per_row, 4096) // 8 * 8)
    tr = min(tr, _round_up(n_rows, 8))
    n_rows_pad = _round_up(n_rows, tr)
    if n_rows_pad != n_rows:
        x_rows = jnp.pad(x_rows, ((0, n_rows_pad - n_rows), (0, 0)))

    z4 = pl.pallas_call(
        _convt_bn_relu_kernel,
        out_shape=jax.ShapeDtypeStruct((n_rows_pad, NC), jnp.float32),
        grid_spec=pltpu.PrefetchScalarGridSpec(
            num_scalar_prefetch=0,
            grid=(n_rows_pad // tr,),
            in_specs=[
                pl.BlockSpec((tr, K), lambda i: (i, 0)),
                pl.BlockSpec((K, NC), lambda i: (0, 0)),
                pl.BlockSpec((1, NC), lambda i: (0, 0)),
            ],
            out_specs=pl.BlockSpec((tr, NC), lambda i: (i, 0)),
        ),
        compiler_params=pltpu.CompilerParams(
            dimension_semantics=("parallel",),
            vmem_limit_bytes=vmem_limit,
        ),
    )(x_rows, w4, bias_cols)

    # free reshape to NHWC, then one clean transpose back to the NCHW module boundary.
    z_nhwc = z4[:n_rows].reshape(N, 2 * H, 2 * W, Cout)
    return jnp.transpose(z_nhwc, (0, 3, 1, 2))


def _reference(x, weight, gamma, beta, eps=1e-5):
    """Pure-JAX reference: ConvTranspose2d(k=2,s=2,no bias) -> train-mode BN -> ReLU."""
    N, Cin, H, W = x.shape
    Cout = weight.shape[1]
    y = jnp.einsum("nchw,codf->nohdwf", x, weight).reshape(N, Cout, 2 * H, 2 * W)
    mean = y.mean(axis=(0, 2, 3), keepdims=True)
    var = ((y - mean) ** 2).mean(axis=(0, 2, 3), keepdims=True)   # biased
    yhat = (y - mean) / jnp.sqrt(var + eps)
    yhat = yhat * gamma.reshape(1, Cout, 1, 1) + beta.reshape(1, Cout, 1, 1)
    return jnp.maximum(yhat, 0.0)


if __name__ == "__main__":
    key = jax.random.PRNGKey(0)
    k_x, k_w = jax.random.split(key)

    N, Cin, H, W = 2, 4, 16, 16
    Cout = 8

    x = jax.random.normal(k_x, (N, Cin, H, W), dtype=jnp.float32)
    # ConvTranspose2d weight shape in PyTorch: (in_channels, out_channels, kH, kW)
    weight = 0.1 * jax.random.normal(k_w, (Cin, Cout, 2, 2), dtype=jnp.float32)
    gamma = 1.0 + 0.1 * jnp.arange(Cout, dtype=jnp.float32)
    beta = 0.05 * jnp.arange(Cout, dtype=jnp.float32)

    out = jax.jit(upsampler_forward)(x, weight, gamma, beta)
    jax.block_until_ready(out)
    assert out.shape == (N, Cout, 2 * H, 2 * W)

    ref = _reference(x, weight, gamma, beta)
    max_err = float(jnp.max(jnp.abs(out - ref)))
    assert max_err < 1e-3, f"mismatch vs reference: {max_err}"

    print("KERNEL_OK")
</pallas_src>

<mosaic_0001>
module attributes {stable_mosaic.version = 11 : i64} {
  func.func @_stats_kernel(%arg0: i32, %arg1: i32, %arg2: i32, %arg3: memref<1x4x256xf32, #tpu.memory_space<vmem>>, %arg4: memref<1x4x1xf32, #tpu.memory_space<vmem>>, %arg5: memref<1x4x4xf32, #tpu.memory_space<vmem>>, %arg6: memref<4x1xf32, #tpu.memory_space<vmem>>, %arg7: memref<4x4xf32, #tpu.memory_space<vmem>>) attributes {dimension_semantics = [#tpu.dimension_semantics<parallel>, #tpu.dimension_semantics<arbitrary>, #tpu.dimension_semantics<arbitrary>], iteration_bounds = array<i64: 1, 2, 1>, scalar_prefetch = 0 : i64, scratch_operands = 2 : i64, tpu.core_type = #tpu.core_type<tc>, window_params = [{transform_indices = @transform_0, window_bounds = array<i64: 1, 4, 256>}, {transform_indices = @transform_1, window_bounds = array<i64: 1, 4, 1>}, {transform_indices = @transform_2, window_bounds = array<i64: 1, 4, 4>}]} {
    %c0_i32 = arith.constant 0 : i32
    %0 = arith.cmpi eq, %arg1, %c0_i32 : i32
    %c0_i32_0 = arith.constant 0 : i32
    %1 = arith.cmpi eq, %arg2, %c0_i32_0 : i32
    %2 = arith.andi %0, %1 : i1
    %3 = arith.extui %2 : i1 to i32
    %c0_i32_1 = arith.constant 0 : i32
    %4 = arith.cmpi ne, %3, %c0_i32_1 : i32
    scf.if %4 {
      %cst_15 = arith.constant 0.000000e+00 : f32
      %21 = vector.broadcast %cst_15 : f32 to vector<4x1xf32>
      %c0_16 = arith.constant 0 : index
      %c0_17 = arith.constant 0 : index
      %22 = vector.load %arg6[%c0_16, %c0_17] : memref<4x1xf32, #tpu.memory_space<vmem>>, vector<4x1xf32>
      tpu.vector_store %arg6[%c0_16, %c0_17], %21 {strides = array<i32>} : memref<4x1xf32, #tpu.memory_space<vmem>>, vector<4x1xf32>,
      %cst_18 = arith.constant 0.000000e+00 : f32
      %23 = vector.broadcast %cst_18 : f32 to vector<4x4xf32>
      %c0_19 = arith.constant 0 : index
      %c0_20 = arith.constant 0 : index
      %24 = vector.load %arg7[%c0_19, %c0_20] : memref<4x4xf32, #tpu.memory_space<vmem>>, vector<4x4xf32>
      tpu.vector_store %arg7[%c0_19, %c0_20], %23 {strides = array<i32>} : memref<4x4xf32, #tpu.memory_space<vmem>>, vector<4x4xf32>,
    } else {
    }
    %c0 = arith.constant 0 : index
    %c0_2 = arith.constant 0 : index
    %c0_3 = arith.constant 0 : index
    %5 = vector.load %arg3[%c0, %c0_2, %c0_3] : memref<1x4x256xf32, #tpu.memory_space<vmem>>, vector<1x4x256xf32>
    %6 = vector.shape_cast %5 : vector<1x4x256xf32> to vector<4x256xf32>
    %c0_4 = arith.constant 0 : index
    %c0_5 = arith.constant 0 : index
    %7 = vector.load %arg6[%c0_4, %c0_5] : memref<4x1xf32, #tpu.memory_space<vmem>>, vector<4x1xf32>
    %cst = arith.constant dense<0.000000e+00> : vector<4xf32>
    %8 = vector.multi_reduction <add>, %6, %cst [1] : vector<4x256xf32> to vector<4xf32>
    %9 = vector.shape_cast %8 : vector<4xf32> to vector<4x1xf32>
    %10 = arith.addf %7, %9 : vector<4x1xf32>
    %c0_6 = arith.constant 0 : index
    %c0_7 = arith.constant 0 : index
    %11 = vector.load %arg6[%c0_6, %c0_7] : memref<4x1xf32, #tpu.memory_space<vmem>>, vector<4x1xf32>
    tpu.vector_store %arg6[%c0_6, %c0_7], %10 {strides = array<i32>} : memref<4x1xf32, #tpu.memory_space<vmem>>, vector<4x1xf32>,
    %c0_8 = arith.constant 0 : index
    %c0_9 = arith.constant 0 : index
    %12 = vector.load %arg7[%c0_8, %c0_9] : memref<4x4xf32, #tpu.memory_space<vmem>>, vector<4x4xf32>
    %cst_10 = arith.constant dense<0.000000e+00> : vector<4x4xf32>
    %13 = tpu.matmul %6, %6, %cst_10 {dimension_numbers = #tpu.dot_dimension_numbers<[1], [1], [0], [0], [0, 0, 1, 0], [], []>} : vector<4x256xf32>, vector<4x256xf32>, vector<4x4xf32> -> vector<4x4xf32>
    %14 = arith.addf %12, %13 : vector<4x4xf32>
    %c0_11 = arith.constant 0 : index
    %c0_12 = arith.constant 0 : index
    %15 = vector.load %arg7[%c0_11, %c0_12] : memref<4x4xf32, #tpu.memory_space<vmem>>, vector<4x4xf32>
    tpu.vector_store %arg7[%c0_11, %c0_12], %14 {strides = array<i32>} : memref<4x4xf32, #tpu.memory_space<vmem>>, vector<4x4xf32>,
    %c1_i32 = arith.constant 1 : i32
    %16 = arith.cmpi eq, %arg1, %c1_i32 : i32
    %c0_i32_13 = arith.constant 0 : i32
    %17 = arith.cmpi eq, %arg2, %c0_i32_13 : i32
    %18 = arith.andi %16, %17 : i1
    %19 = arith.extui %18 : i1 to i32
    %c0_i32_14 = arith.constant 0 : i32
    %20 = arith.cmpi ne, %19, %c0_i32_14 : i32
    scf.if %20 {
      %c0_15 = arith.constant 0 : index
      %c0_16 = arith.constant 0 : index
      %21 = vector.load %arg6[%c0_15, %c0_16] : memref<4x1xf32, #tpu.memory_space<vmem>>, vector<4x1xf32>
      %c0_17 = arith.constant 0 : index
      %c0_18 = arith.constant 0 : index
      %c0_19 = arith.constant 0 : index
      %22 = vector.load %arg4[%c0_17, %c0_18, %c0_19] : memref<1x4x1xf32, #tpu.memory_space<vmem>>, vector<1x4x1xf32>
      %23 = vector.shape_cast %22 : vector<1x4x1xf32> to vector<4x1xf32>
      %24 = vector.shape_cast %21 : vector<4x1xf32> to vector<1x4x1xf32>
      tpu.vector_store %arg4[%c0_17, %c0_18, %c0_19], %24 {strides = array<i32>} : memref<1x4x1xf32, #tpu.memory_space<vmem>>, vector<1x4x1xf32>,
      %c0_20 = arith.constant 0 : index
      %c0_21 = arith.constant 0 : index
      %25 = vector.load %arg7[%c0_20, %c0_21] : memref<4x4xf32, #tpu.memory_space<vmem>>, vector<4x4xf32>
      %c0_22 = arith.constant 0 : index
      %c0_23 = arith.constant 0 : index
      %c0_24 = arith.constant 0 : index
      %26 = vector.load %arg5[%c0_22, %c0_23, %c0_24] : memref<1x4x4xf32, #tpu.memory_space<vmem>>, vector<1x4x4xf32>
      %27 = vector.shape_cast %26 : vector<1x4x4xf32> to vector<4x4xf32>
      %28 = vector.shape_cast %25 : vector<4x4xf32> to vector<1x4x4xf32>
      tpu.vector_store %arg5[%c0_22, %c0_23, %c0_24], %28 {strides = array<i32>} : memref<1x4x4xf32, #tpu.memory_space<vmem>>, vector<1x4x4xf32>,
    } else {
    }
    return
  }
  func.func @transform_0(%arg0: i32, %arg1: i32, %arg2: i32) -> (i32, i32, i32) {
    %c1_i32 = arith.constant 1 : i32
    %0 = arith.muli %arg0, %c1_i32 : i32
    %1 = arith.addi %0, %arg2 : i32
    %c0_i32 = arith.constant 0 : i32
    %c0_i32_0 = arith.constant 0 : i32
    return %arg1, %c0_i32, %1 : i32, i32, i32
  }
  func.func @transform_1(%arg0: i32, %arg1: i32, %arg2: i32) -> (i32, i32, i32) {
    %c0_i32 = arith.constant 0 : i32
    %c0_i32_0 = arith.constant 0 : i32
    %c0_i32_1 = arith.constant 0 : i32
    return %arg0, %c0_i32, %c0_i32_0 : i32, i32, i32
  }
  func.func @transform_2(%arg0: i32, %arg1: i32, %arg2: i32) -> (i32, i32, i32) {
    %c0_i32 = arith.constant 0 : i32
    %c0_i32_0 = arith.constant 0 : i32
    %c0_i32_1 = arith.constant 0 : i32
    return %arg0, %c0_i32, %c0_i32_0 : i32, i32, i32
  }
}

module attributes {stable_mosaic.version = 11 : i64} {
  func.func @_convt_bn_relu_kernel(%arg0: i32, %arg1: memref<32x64xf32, #tpu.memory_space<vmem>>, %arg2: memref<64x512xf32, #tpu.memory_space<vmem>>, %arg3: memref<1x512xf32, #tpu.memory_space<vmem>>, %arg4: memref<32x512xf32, #tpu.memory_space<vmem>>) attributes {dimension_semantics = [#tpu.dimension_semantics<parallel>], iteration_bounds = array<i64: 1>, scalar_prefetch = 0 : i64, scratch_operands = 0 : i64, tpu.core_type = #tpu.core_type<tc>, window_params = [{transform_indices = @transform_0, window_bounds = array<i64: 32, 64>}, {pipeline_mode = #tpu.pipeline_mode<synchronous>, transform_indices = @transform_1, window_bounds = array<i64: 64, 512>}, {pipeline_mode = #tpu.pipeline_mode<synchronous>, transform_indices = @transform_2, window_bounds = array<i64: 1, 512>}, {transform_indices = @transform_3, window_bounds = array<i64: 32, 512>}]} {
    %c0 = arith.constant 0 : index
    %c0_0 = arith.constant 0 : index
    %0 = vector.load %arg1[%c0, %c0_0] : memref<32x64xf32, #tpu.memory_space<vmem>>, vector<32x64xf32>
    %c0_1 = arith.constant 0 : index
    %c0_2 = arith.constant 0 : index
    %1 = vector.load %arg2[%c0_1, %c0_2] : memref<64x512xf32, #tpu.memory_space<vmem>>, vector<64x512xf32>
    %cst = arith.constant dense<0.000000e+00> : vector<32x512xf32>
    %2 = tpu.matmul %0, %1, %cst {dimension_numbers = #tpu.dot_dimension_numbers<[1], [0], [0], [1], [0, 0, 1, 1], [], []>} : vector<32x64xf32>, vector<64x512xf32>, vector<32x512xf32> -> vector<32x512xf32>
    %c0_3 = arith.constant 0 : index
    %c0_4 = arith.constant 0 : index
    %3 = vector.load %arg3[%c0_3, %c0_4] : memref<1x512xf32, #tpu.memory_space<vmem>>, vector<1x512xf32>
    %4 = vector.broadcast %3 : vector<1x512xf32> to vector<32x512xf32>
    %5 = arith.addf %2, %4 : vector<32x512xf32>
    %cst_5 = arith.constant 0.000000e+00 : f32
    %6 = vector.broadcast %cst_5 : f32 to vector<32x512xf32>
    %7 = arith.maximumf %5, %6 : vector<32x512xf32>
    %c0_6 = arith.constant 0 : index
    %c0_7 = arith.constant 0 : index
    %8 = vector.load %arg4[%c0_6, %c0_7] : memref<32x512xf32, #tpu.memory_space<vmem>>, vector<32x512xf32>
    tpu.vector_store %arg4[%c0_6, %c0_7], %7 {strides = array<i32>} : memref<32x512xf32, #tpu.memory_space<vmem>>, vector<32x512xf32>,
    return
  }
  func.func @transform_0(%arg0: i32) -> (i32, i32) {
    %c0_i32 = arith.constant 0 : i32
    %c0_i32_0 = arith.constant 0 : i32
    return %arg0, %c0_i32 : i32, i32
  }
  func.func @transform_1(%arg0: i32) -> (i32, i32) {
    %c0_i32 = arith.constant 0 : i32
    %c0_i32_0 = arith.constant 0 : i32
    %c0_i32_1 = arith.constant 0 : i32
    return %c0_i32, %c0_i32_0 : i32, i32
  }
  func.func @transform_2(%arg0: i32) -> (i32, i32) {
    %c0_i32 = arith.constant 0 : i32
    %c0_i32_0 = arith.constant 0 : i32
    %c0_i32_1 = arith.constant 0 : i32
    return %c0_i32, %c0_i32_0 : i32, i32
  }
  func.func @transform_3(%arg0: i32) -> (i32, i32) {
    %c0_i32 = arith.constant 0 : i32
    %c0_i32_0 = arith.constant 0 : i32
    return %arg0, %c0_i32 : i32, i32
  }
}

</mosaic_0001>

<llo_original>
// kernel: tile.8
$region0: #{tile.8}
  #allocation0 [shape = 's32[1]{0}', space=sflag, size = 0x4, scoped, tag = 'scoped memory for tile.8']
  %s0 = inlined_call_operand.vmem [shape: f32[8], index: 0, kind: input, shape index: {}]
  %s1 = inlined_call_operand.vmem [shape: f32[64,8], index: 1, kind: output, shape index: {}]
  // Predicated region
  $region2: #{tile.8} parent=0 // pred_check
    _
  $region3: #{tile.8} parent=0 // pred_check_branch
    %3 = sbr.rel (0) target = $region5
  $region4: #{tile.8} parent=0 // pred_region
    _
  $region5: #{tile.8} parent=0 // pred_fallthru
    _
  %v4 = vld [vmem:[%s0] ss:$0 sm:$0xff]
  %5 = vst [vmem:[%s1] sm:$0xff] %v4
  %s6 = scalar_lea.vmem %s1, 8
  %7 = vst [vmem:[%s6] sm:$0xff] %v4
  %s8 = scalar_lea.vmem %s1, 16
  %9 = vst [vmem:[%s8] sm:$0xff] %v4
  %s10 = scalar_lea.vmem %s1, 24
  %11 = vst [vmem:[%s10] sm:$0xff] %v4
  %s12 = scalar_lea.vmem %s1, 32
  %13 = vst [vmem:[%s12] sm:$0xff] %v4
  %s14 = scalar_lea.vmem %s1, 40
  %15 = vst [vmem:[%s14] sm:$0xff] %v4
  %s16 = scalar_lea.vmem %s1, 48
  %17 = vst [vmem:[%s16] sm:$0xff] %v4
  %s18 = scalar_lea.vmem %s1, 56
  %19 = vst [vmem:[%s18] sm:$0xff] %v4

// kernel: tile.9
$region0: #{tile.9}
  %s0 = inlined_call_operand.vmem [shape: f32[64,8], index: 0, kind: input, shape index: {}]
  %s1 = inlined_call_operand.vmem [shape: f32[1,512], index: 1, kind: output, shape index: {}]
  $region1: #{tile.9} parent=0
    #allocation0 [shape = 'u8[16384]{0}', space=vmem, size = 0x4000, scoped, tag = 'scoped mem for output reshape']
    %s2 = smov 3
    %v3 = vld [vmem:[%s0] ss:$16 sm:%s2]
    %s4 = smov 12
    %v5 = vld [vmem:[%s0] ss:$16 sm:%s4]
    %vm6 = vcmask 1043458
    %v7 = vsel %vm6, %v5, %v3
    %vm8 = vcmask 64512
    %9 = vst.msk [vmem:[#allocation0] ss:$8 sm:$0xf] %vm8, %v7
    %s10 = scalar_lea.vmem %s0, 15
    %s11 = smov 3
    %v12 = vld [vmem:[%s10] ss:$16 sm:%s11]
    %s13 = scalar_lea.vmem %s0, 15
    %s14 = smov 12
    %v15 = vld [vmem:[%s13] ss:$16 sm:%s14]
    %vm16 = vcmask 1043458
    %v17 = vsel %vm16, %v15, %v12
    %18 = vrot.lane.b32.xlu0 %v17, 120
    %v19 = vpop.permute.xlu0 %18
    %vm20 = vcmask 1048512
    %21 = vst.msk [vmem:[#allocation0] ss:$8 sm:$0xf] %vm20, %v19
    %s22 = scalar_lea.vmem %s0, 14
    %s23 = smov 3
    %v24 = vld [vmem:[%s22] ss:$16 sm:%s23]
    %s25 = scalar_lea.vmem %s0, 14
    %s26 = smov 12
    %v27 = vld [vmem:[%s25] ss:$16 sm:%s26]
    %vm28 = vcmask 1043458
    %v29 = vsel %vm28, %v27, %v24
    %30 = vrot.lane.b32.xlu0 %v29, 112
    %v31 = vpop.permute.xlu0 %30
    %vm32 = vcmask 982912
    %33 = vst.msk [vmem:[#allocation0] ss:$8 sm:$0xf] %vm32, %v31
    %s34 = scalar_lea.vmem %s0, 13
    %s35 = smov 3
    %v36 = vld [vmem:[%s34] ss:$16 sm:%s35]
    %s37 = scalar_lea.vmem %s0, 13
    %s38 = smov 12
    %v39 = vld [vmem:[%s37] ss:$16 sm:%s38]
    %vm40 = vcmask 1043458
    %v41 = vsel %vm40, %v39, %v36
    %42 = vrot.lane.b32.xlu0 %v41, 104
    %v43 = vpop.permute.xlu0 %42
    %vm44 = vcmask 917312
    %45 = vst.msk [vmem:[#allocation0] ss:$8 sm:$0xf] %vm44, %v43
    %s46 = scalar_lea.vmem %s0, 12
    %s47 = smov 3
    %v48 = vld [vmem:[%s46] ss:$16 sm:%s47]
    %s49 = scalar_lea.vmem %s0, 12
    %s50 = smov 12
    %v51 = vld [vmem:[%s49] ss:$16 sm:%s50]
    %vm52 = vcmask 1043458
    %v53 = vsel %vm52, %v51, %v48
    %54 = vrot.lane.b32.xlu0 %v53, 96
    %v55 = vpop.permute.xlu0 %54
    %vm56 = vcmask 851712
    %57 = vst.msk [vmem:[#allocation0] ss:$8 sm:$0xf] %vm56, %v55
    %s58 = scalar_lea.vmem %s0, 11
    %s59 = smov 3
    %v60 = vld [vmem:[%s58] ss:$16 sm:%s59]
    %s61 = scalar_lea.vmem %s0, 11
    %s62 = smov 12
    %v63 = vld [vmem:[%s61] ss:$16 sm:%s62]
    %vm64 = vcmask 1043458
    %v65 = vsel %vm64, %v63, %v60
    %66 = vrot.lane.b32.xlu0 %v65, 88
    %v67 = vpop.permute.xlu0 %66
    %vm68 = vcmask 786112
    %69 = vst.msk [vmem:[#allocation0] ss:$8 sm:$0xf] %vm68, %v67
    %s70 = scalar_lea.vmem %s0, 10
    %s71 = smov 3
    %v72 = vld [vmem:[%s70] ss:$16 sm:%s71]
    %s73 = scalar_lea.vmem %s0, 10
    %s74 = smov 12
    %v75 = vld [vmem:[%s73] ss:$16 sm:%s74]
    %vm76 = vcmask 1043458
    %v77 = vsel %vm76, %v75, %v72
    %78 = vrot.lane.b32.xlu0 %v77, 80
    %v79 = vpop.permute.xlu0 %78
    %vm80 = vcmask 720512
    %81 = vst.msk [vmem:[#allocation0] ss:$8 sm:$0xf] %vm80, %v79
    %s82 = scalar_lea.vmem %s0, 9
    %s83 = smov 3
    %v84 = vld [vmem:[%s82] ss:$16 sm:%s83]
    %s85 = scalar_lea.vmem %s0, 9
    %s86 = smov 12
    %v87 = vld [vmem:[%s85] ss:$16 sm:%s86]
    %vm88 = vcmask 1043458
    %v89 = vsel %vm88, %v87, %v84
    %90 = vrot.lane.b32.xlu0 %v89, 72
    %v91 = vpop.permute.xlu0 %90
    %vm92 = vcmask 654912
    %93 = vst.msk [vmem:[#allocation0] ss:$8 sm:$0xf] %vm92, %v91
    %s94 = scalar_lea.vmem %s0, 8
    %s95 = smov 3
    %v96 = vld [vmem:[%s94] ss:$16 sm:%s95]
    %s97 = scalar_lea.vmem %s0, 8
    %s98 = smov 12
    %v99 = vld [vmem:[%s97] ss:$16 sm:%s98]
    %vm100 = vcmask 1043458
    %v101 = vsel %vm100, %v99, %v96
    %102 = vrot.lane.b32.xlu0 %v101, 64
    %v103 = vpop.permute.xlu0 %102
    %vm104 = vcmask 589312
    %105 = vst.msk [vmem:[#allocation0] ss:$8 sm:$0xf] %vm104, %v103
    %s106 = scalar_lea.vmem %s0, 7
    %s107 = smov 3
    %v108 = vld [vmem:[%s106] ss:$16 sm:%s107]
    %s109 = scalar_lea.vmem %s0, 7
    %s110 = smov 12
    %v111 = vld [vmem:[%s109] ss:$16 sm:%s110]
    %vm112 = vcmask 1043458
    %v113 = vsel %vm112, %v111, %v108
    %114 = vrot.lane.b32.xlu0 %v113, 56
    %v115 = vpop.permute.xlu0 %114
    %vm116 = vcmask 523712
    %117 = vst.msk [vmem:[#allocation0] ss:$8 sm:$0xf] %vm116, %v115
    %s118 = scalar_lea.vmem %s0, 6
    %s119 = smov 3
    %v120 = vld [vmem:[%s118] ss:$16 sm:%s119]
    %s121 = scalar_lea.vmem %s0, 6
    %s122 = smov 12
    %v123 = vld [vmem:[%s121] ss:$16 sm:%s122]
    %vm124 = vcmask 1043458
    %v125 = vsel %vm124, %v123, %v120
    %126 = vrot.lane.b32.xlu0 %v125, 48
    %v127 = vpop.permute.xlu0 %126
    %vm128 = vcmask 458112
    %129 = vst.msk [vmem:[#allocation0] ss:$8 sm:$0xf] %vm128, %v127
    %s130 = scalar_lea.vmem %s0, 5
    %s131 = smov 3
    %v132 = vld [vmem:[%s130] ss:$16 sm:%s131]
    %s133 = scalar_lea.vmem %s0, 5
    %s134 = smov 12
    %v135 = vld [vmem:[%s133] ss:$16 sm:%s134]
    %vm136 = vcmask 1043458
    %v137 = vsel %vm136, %v135, %v132
    %138 = vrot.lane.b32.xlu0 %v137, 40
    %v139 = vpop.permute.xlu0 %138
    %vm140 = vcmask 392512
    %141 = vst.msk [vmem:[#allocation0] ss:$8 sm:$0xf] %vm140, %v139
    %s142 = scalar_lea.vmem %s0, 4
    %s143 = smov 3
    %v144 = vld [vmem:[%s142] ss:$16 sm:%s143]
    %s145 = scalar_lea.vmem %s0, 4
    %s146 = smov 12
    %v147 = vld [vmem:[%s145] ss:$16 sm:%s146]
    %vm148 = vcmask 1043458
    %v149 = vsel %vm148, %v147, %v144
    %150 = vrot.lane.b32.xlu0 %v149, 32
    %v151 = vpop.permute.xlu0 %150
    %vm152 = vcmask 326912
    %153 = vst.msk [vmem:[#allocation0] ss:$8 sm:$0xf] %vm152, %v151
    %s154 = scalar_lea.vmem %s0, 3
    %s155 = smov 3
    %v156 = vld [vmem:[%s154] ss:$16 sm:%s155]
    %s157 = scalar_lea.vmem %s0, 3
    %s158 = smov 12
    %v159 = vld [vmem:[%s157] ss:$16 sm:%s158]
    %vm160 = vcmask 1043458
    %v161 = vsel %vm160, %v159, %v156
    %162 = vrot.lane.b32.xlu0 %v161, 24
    %v163 = vpop.permute.xlu0 %162
    %vm164 = vcmask 261312
    %165 = vst.msk [vmem:[#allocation0] ss:$8 sm:$0xf] %vm164, %v163
    %s166 = scalar_lea.vmem %s0, 2
    %s167 = smov 3
    %v168 = vld [vmem:[%s166] ss:$16 sm:%s167]
    %s169 = scalar_lea.vmem %s0, 2
    %s170 = smov 12
    %v171 = vld [vmem:[%s169] ss:$16 sm:%s170]
    %vm172 = vcmask 1043458
    %v173 = vsel %vm172, %v171, %v168
    %174 = vrot.lane.b32.xlu0 %v173, 16
    %v175 = vpop.permute.xlu0 %174
    %vm176 = vcmask 195712
    %177 = vst.msk [vmem:[#allocation0] ss:$8 sm:$0xf] %vm176, %v175
    %s178 = scalar_lea.vmem %s0, 1
    %s179 = smov 3
    %v180 = vld [vmem:[%s178] ss:$16 sm:%s179]
    %s181 = scalar_lea.vmem %s0, 1
    %s182 = smov 12
    %v183 = vld [vmem:[%s181] ss:$16 sm:%s182]
    %vm184 = vcmask 1043458
    %v185 = vsel %vm184, %v183, %v180
    %186 = vrot.lane.b32.xlu0 %v185, 8
    %v187 = vpop.permute.xlu0 %186
    %vm188 = vcmask 130112
    %189 = vst.msk [vmem:[#allocation0] ss:$8 sm:$0xf] %vm188, %v187
    %s191 = ssub.s32 2, 1
    %v192 = vld [vmem:[#allocation0] sm:%s191]
    %s194 = ssub.s32 2, 1
    %195 = vst [vmem:[%s1] sm:%s194] %v192
    %s196 = scalar_lea.vmem [#allocation0], 8
    %v197 = vld [vmem:[%s196] sm:%s191]
    %s199 = ssub.s32 2, 1
    %s200 = scalar_lea.vmem %s1, 1
    %201 = vst [vmem:[%s200] sm:%s199] %v197
    %s202 = scalar_lea.vmem [#allocation0], 16
    %v203 = vld [vmem:[%s202] sm:%s191]
    %s205 = ssub.s32 2, 1
    %s206 = scalar_lea.vmem %s1, 2
    %207 = vst [vmem:[%s206] sm:%s205] %v203
    %s208 = scalar_lea.vmem [#allocation0], 24
    %v209 = vld [vmem:[%s208] sm:%s191]
    %s211 = ssub.s32 2, 1
    %s212 = scalar_lea.vmem %s1, 3
    %213 = vst [vmem:[%s212] sm:%s211] %v209

// kernel: upsampler_forward.2
$region0: #{upsampler_forward.2}
  #allocation0 [shape = 'u32[]', space=smem, size = 0x4, offset = 0x4, fixed_abs, tag = 'smem constant byte address 0x4 - core index']
  #allocation1 [shape = 'u32[72,128]{1,0:T(1,128)}', space=vmem, size = 0x9000, scoped, tag = 'internal scratch']
  #allocation2 [shape = 'f32[4,1]{1,0:T(4,128)}', space=vmem, size = 0x800, scoped, tag = 'scratch operand']
  #allocation3 [shape = 'f32[4,4]{1,0:T(4,128)}', space=vmem, size = 0x800, scoped, tag = 'scratch operand']
  %s0 = inlined_call_operand.vmem [shape: f32[2,4,256], index: 0, kind: input, shape index: {}]
  %s1 = inlined_call_operand.vmem [shape: f32[1,4,1], index: 1, kind: output, shape index: {0}]
  %s2 = inlined_call_operand.vmem [shape: f32[1,4,4], index: 2, kind: output, shape index: {1}]
  %3 = xla_tuple %s1, %s2
  %s4 = sld [smem:[#allocation0]]
  $region53: #{upsampler_forward.2} parent=0
    _
  %s6 = ssub.s32 1, %s4
  %s7 = scalar_select 0, %s6, %s4
  loop: start=0, step=1, limit=4
  $region2: #{upsampler_forward.2} parent=0 // loop_pre_header
    _
  $region3: #{upsampler_forward.2} parent=0 // loop_header
    %s9 = sphi 0, %s13
    %p10 = scmp.ge.s32.totalorder %s9, 4
    %s16 = sphi 0, %s35
    %s17 = sphi 0, %s31
    %s18 = sphi 0, %s27
    %s19 = sphi 0, %s16
    %s20 = sphi 0, %s17
    %s21 = sphi 0, %s18
    %s22 = sphi 0, %s19
    %s23 = sphi 0, %s20
    %s24 = sphi 0, %s21
    %s42 = sphi 0, %s44
    %s45 = sphi 0, %s42
    %s46 = sphi 0, %s45
    %s62 = sphi 0, %s46
    %s68 = sphi 0, %s70
    %s71 = sphi 0, %s68
    %s72 = sphi 0, %s71
    %s88 = sphi 0, %s72
    %s94 = sphi 0, %s96
    %s97 = sphi 0, %s94
    %s98 = sphi 0, %s97
    %s114 = sphi 0, %s98
  $region4: #{upsampler_forward.2} parent=0 // loop_header_branch
    %12 = sbr.rel (%p10) target = $region8
  $region5: #{upsampler_forward.2} parent=0 // loop_body
    %s14 = ssub.s32 %s9, 1
    %s15 = ssub.s32 %s9, 2
    %s25 = sadd.s32 1, %s18
    %p26 = scmp.ge.s32.totalorder %s25, 1
    %s27 = scalar_select %p26, 0, %s25
    %s28 = sadd.s32 1, %s17
    %s29 = scalar_select %p26, %s28, %s17
    %p30 = scmp.ge.s32.totalorder %s29, 2
    %s31 = scalar_select %p30, 0, %s29
    %s32 = sadd.s32 1, %s16
    %s33 = scalar_select %p30, %s32, %s16
    %p34 = scmp.ge.s32.totalorder %s33, 1
    %s35 = scalar_select %p34, 0, %s33
    %s36 = sadd.s32 %s16, %s18
    %s37 = sadd.s32 %s35, %s27
    %s38 = ssub.s32 %s17, %s31
    %s39 = ssub.s32 %s36, %s37
    %s40 = sor.u32 %s38, %s39
    %p41 = scmp.eq.s32.totalorder %s40, 0
    %s43 = sadd.s32 %s42, 1
    %s44 = scalar_select %p41, %s42, %s43
    %p47 = pneg %p41
    %p48 = scmp.eq.s32.totalorder %s9, 1
    %p49 = por %p47, %p48
    %p50 = scmp.ne.s32.totalorder %s42, %s45
    %p51 = scmp.eq.s32.totalorder %s9, 0
    %p52 = por %p50, %p51
    %p53 = scmp.ne.s32.totalorder %s42, %s45
    %p54 = scmp.eq.s32.totalorder %s14, 1
    %p55 = por %p53, %p54
    %p56 = scmp.ne.s32.totalorder %s45, %s46
    %p57 = scmp.eq.s32.totalorder %s14, 0
    %p58 = por %p56, %p57
    %p59 = scmp.ne.s32.totalorder %s45, %s46
    %p60 = scmp.eq.s32.totalorder %s15, 1
    %p61 = por %p59, %p60
    %p63 = scmp.ne.s32.totalorder %s46, %s62
    %p64 = scmp.eq.s32.totalorder %s15, 0
    %p65 = por %p63, %p64
    %s66 = ssub.s32 %s16, %s35
    %p67 = scmp.eq.s32.totalorder %s66, 0
    %s69 = sadd.s32 %s68, 1
    %s70 = scalar_select %p67, %s68, %s69
    %p73 = pneg %p67
    %p74 = scmp.eq.s32.totalorder %s9, 1
    %p75 = por %p73, %p74
    %p76 = scmp.ne.s32.totalorder %s68, %s71
    %p77 = scmp.eq.s32.totalorder %s9, 0
    %p78 = por %p76, %p77
    %p79 = scmp.ne.s32.totalorder %s68, %s71
    %p80 = scmp.eq.s32.totalorder %s14, 1
    %p81 = por %p79, %p80
    %p82 = scmp.ne.s32.totalorder %s71, %s72
    %p83 = scmp.eq.s32.totalorder %s14, 0
    %p84 = por %p82, %p83
    %p85 = scmp.ne.s32.totalorder %s71, %s72
    %p86 = scmp.eq.s32.totalorder %s15, 1
    %p87 = por %p85, %p86
    %p89 = scmp.ne.s32.totalorder %s72, %s88
    %p90 = scmp.eq.s32.totalorder %s15, 0
    %p91 = por %p89, %p90
    %s92 = ssub.s32 %s16, %s35
    %p93 = scmp.eq.s32.totalorder %s92, 0
    %s95 = sadd.s32 %s94, 1
    %s96 = scalar_select %p93, %s94, %s95
    %p99 = pneg %p93
    %p100 = scmp.eq.s32.totalorder %s9, 1
    %p101 = por %p99, %p100
    %p102 = scmp.ne.s32.totalorder %s94, %s97
    %p103 = scmp.eq.s32.totalorder %s9, 0
    %p104 = por %p102, %p103
    %p105 = scmp.ne.s32.totalorder %s94, %s97
    %p106 = scmp.eq.s32.totalorder %s14, 1
    %p107 = por %p105, %p106
    %p108 = scmp.ne.s32.totalorder %s97, %s98
    %p109 = scmp.eq.s32.totalorder %s14, 0
    %p110 = por %p108, %p109
    %p111 = scmp.ne.s32.totalorder %s97, %s98
    %p112 = scmp.eq.s32.totalorder %s15, 1
    %p113 = por %p111, %p112
    %p115 = scmp.ne.s32.totalorder %s98, %s114
    %p116 = scmp.eq.s32.totalorder %s15, 0
    %p117 = por %p115, %p116
    %p118 = scmp.le.s32.totalorder 1, %s9
    %p119 = scmp.lt.s32.totalorder %s9, 3
    %p120 = pnand %p118, %p119
    %p121 = pneg %p120
    // Predicated region
    $region9: #{upsampler_forward.2} parent=5 // pred_check
      _
    $region10: #{upsampler_forward.2} parent=5 // pred_check_branch
      %123 = sbr.rel (%p120) target = $region12
    $region11: #{upsampler_forward.2} parent=5 // pred_region
      %s124 = ssub.s32 %s9, 1
    $region12: #{upsampler_forward.2} parent=5 // pred_fallthru
      _
    %p125 = scmp.lt.s32.totalorder %s9, 2
    // Predicated region
    $region13: #{upsampler_forward.2} parent=5 // pred_check
      %p126 = pneg %p125
    $region14: #{upsampler_forward.2} parent=5 // pred_check_branch
      %128 = sbr.rel (%p126) target = $region16
    $region15: #{upsampler_forward.2} parent=5 // pred_region
      // Predicated region
      $region17: #{upsampler_forward.2} parent=15 // pred_check
        %p129 = pneg %p52
      $region18: #{upsampler_forward.2} parent=15 // pred_check_branch
        %131 = sbr.rel (%p129) target = $region20
      $region19: #{upsampler_forward.2} parent=15 // pred_region
        %s132 = sadd.s32 %s16, %s18
        %s133 = smul.u32 2, %s132
        %p134 = scmp.lt.s32.totalorder %s17, 1
        %s135 = scalar_select %p134, %s17, 1
        %p136 = scmp.lt.s32.totalorder %s133, 1
        %s137 = scalar_select %p136, %s133, 1
        %s138 = smul.addr %s135, 2
        %s139 = sadd.s32 %s137, %s138
        %s140 = smul.addr %s139, 4
        %s141 = scalar_lea.vmem %s0, %s140
        %s142 = sadd.s32 %s16, %s18
        %s143 = smul.u32 2, %s142
      $region20: #{upsampler_forward.2} parent=15 // pred_fallthru
        _
    $region16: #{upsampler_forward.2} parent=5 // pred_fallthru
      _
    %p144 = scmp.le.s32.totalorder 1, %s9
    %p145 = scmp.lt.s32.totalorder %s9, 3
    %p146 = pnand %p144, %p145
    %p147 = pneg %p146
    // Predicated region
    $region21: #{upsampler_forward.2} parent=5 // pred_check
      _
    $region22: #{upsampler_forward.2} parent=5 // pred_check_branch
      %149 = sbr.rel (%p146) target = $region24
    $region23: #{upsampler_forward.2} parent=5 // pred_region
      %s150 = ssub.s32 %s9, 1
      %s151 = sadd.s32 %s19, %s21
      %s152 = smul.u32 2, %s151
      %p153 = scmp.lt.s32.totalorder %s20, 1
      %s154 = scalar_select %p153, %s20, 1
      %p155 = scmp.lt.s32.totalorder %s152, 1
      %s156 = scalar_select %p155, %s152, 1
      %s157 = smul.addr %s154, 2
      %s158 = sadd.s32 %s156, %s157
      %s159 = smul.addr %s158, 4
      %s160 = scalar_lea.vmem %s0, %s159
      %p161 = pneg %p58
      %p162 = pneg %p55
      %p163 = pneg %p84
      %p164 = pneg %p81
      %p165 = scmp.lt.s32.totalorder %s19, 0
      %s166 = scalar_select %p165, %s19, 0
      %s167 = smul.addr %s166, 4
      %s168 = scalar_lea.vmem %s1, %s167
      %p169 = pneg %p110
      %p170 = pneg %p107
      %p171 = scmp.lt.s32.totalorder %s19, 0
      %s172 = scalar_select %p171, %s19, 0
      %s173 = smul.addr %s172, 4
      %s174 = scalar_lea.vmem %s2, %s173
      %s175 = sadd.s32 %s19, %s21
      %s176 = smul.u32 2, %s175
      %p177 = scmp.lt.s32.totalorder %s20, 1
      %s178 = scalar_select %p177, %s20, 1
      %p179 = scmp.lt.s32.totalorder %s176, 1
      %s180 = scalar_select %p179, %s176, 1
      %s181 = smul.addr %s178, 2
      %s182 = sadd.s32 %s180, %s181
      %s183 = smul.addr %s182, 4
      %s184 = scalar_lea.vmem %s0, %s183
      %s185 = sadd.s32 %s19, %s21
      %s186 = smul.u32 2, %s185
      %p187 = scmp.lt.s32.totalorder %s19, 0
      %s188 = scalar_select %p187, %s19, 0
      %s189 = smul.addr %s188, 4
      %s190 = scalar_lea.vmem %s1, %s189
      %p191 = scmp.lt.s32.totalorder %s19, 0
      %s192 = scalar_select %p191, %s19, 0
      %s193 = smul.addr %s192, 4
      %s194 = scalar_lea.vmem %s2, %s193
      %p195 = scmp.eq.s32.totalorder %s20, 0
      %p196 = scmp.eq.s32.totalorder %s21, 0
      %p197 = pnand %p195, %p196
      %p198 = pneg %p197
      // Predicated region
      $region25: #{upsampler_forward.2} parent=23 // pred_check
        _
      $region26: #{upsampler_forward.2} parent=23 // pred_check_branch
        %200 = sbr.rel (%p197) target = $region28
      $region27: #{upsampler_forward.2} parent=23 // pred_region
        %vm201 = vcmask 3072
        %202 = vst.msk [vmem:[#allocation2] sm:$0xf] %vm201, 0.0
        %vm203 = vcmask 27648
        %204 = vst.msk [vmem:[#allocation3] sm:$0xf] %vm203, 0.0
      $region28: #{upsampler_forward.2} parent=23 // pred_fallthru
        _
      %v205 = vld [vmem:[%s184] sm:$0xff]
      %v206 = vld [vmem:[#allocation2] sm:$0xf]
      %208 = vst [vmem:[#allocation1] ss:$2 sm:$0xff] %v205
      %v209 = vld.sshfl [vmem:[#allocation1] sm:$0xff pattern:$0x75316420]
      %v210 = vld.sshfl [vmem:[#allocation1 + $0x8] sm:$0xff pattern:$0x75316420]
      %vm213 = vcmask 1043456
      %v214 = vsel %vm213, %v209, 0.0
      %v215 = vsel %vm213, %v210, 0.0
      %v216 = vadd.f32 %v214, %v215
      %217 = vadd.xlane.f32.xlu0 %v216
      %v218 = vpop.xlane.xlu0 %217
      %v219 = vadd.f32 %v206, %v218
      %vm220 = vcmask 3072
      %221 = vst.msk [vmem:[#allocation2] sm:$0xf] %vm220, %v219
      %v222 = vld [vmem:[#allocation3] sm:$0xf]
      %223 = vst [vmem:[#allocation1] ss:$2 sm:$0xff] %v205
      %v224 = vld.sshfl [vmem:[#allocation1] sm:$0xff pattern:$0x75316420]
      %v225 = vld.sshfl [vmem:[#allocation1 + $0x8] sm:$0xff pattern:$0x75316420]
      %228 = vst [vmem:[#allocation1] ss:$2 sm:$0xff] %v205
      %v229 = vld.sshfl [vmem:[#allocation1] sm:$0xff pattern:$0x75316420]
      %v230 = vld.sshfl [vmem:[#allocation1 + $0x8] sm:$0xff pattern:$0x75316420]
      %233 = vmatpush.xpose.msra.mxu0 0.0
      %234 = vmatpush.xpose.msra.mxu0 0.0
      %235 = vmatpush.xpose.msra.mxu0 0.0
      %236 = vmatpush.xpose.msra.mxu0 0.0
      %237 = vmatpush.xpose.msra.mxu0 0.0
      %238 = vmatpush.xpose.msra.mxu0 0.0
      %239 = vmatpush.xpose.msra.mxu0 0.0
      %240 = vmatpush.xpose.msra.mxu0 0.0
      %241 = vmatpush.xpose.msra.mxu0 0.0
      %242 = vmatpush.xpose.msra.mxu0 0.0
      %243 = vmatpush.xpose.msra.mxu0 0.0
      %244 = vmatpush.xpose.msra.mxu0 0.0
      %245 = vmatpush.xpose.msra.mxu0 0.0
      %246 = vmatpush.xpose.msra.mxu0 0.0
      %247 = vmatpush.xpose.msra.mxu0 0.0
      %248 = vmatpush.xpose.msra.mxu0 %v229
      %249 = vmatmul.f32.gmra.mxu0 %v224
      %v250 = vpop.f32.mrf.mxu0
      %v251 = vadd.f32 0.0, %v250
      %252 = vdwg.mxu0
      %253 = vmatpush.xpose.msra.mxu0 0.0
      %254 = vmatpush.xpose.msra.mxu0 0.0
      %255 = vmatpush.xpose.msra.mxu0 0.0
      %256 = vmatpush.xpose.msra.mxu0 0.0
      %257 = vmatpush.xpose.msra.mxu0 0.0
      %258 = vmatpush.xpose.msra.mxu0 0.0
      %259 = vmatpush.xpose.msra.mxu0 0.0
      %260 = vmatpush.xpose.msra.mxu0 0.0
      %261 = vmatpush.xpose.msra.mxu0 0.0
      %262 = vmatpush.xpose.msra.mxu0 0.0
      %263 = vmatpush.xpose.msra.mxu0 0.0
      %264 = vmatpush.xpose.msra.mxu0 0.0
      %265 = vmatpush.xpose.msra.mxu0 0.0
      %266 = vmatpush.xpose.msra.mxu0 0.0
      %267 = vmatpush.xpose.msra.mxu0 0.0
      %268 = vmatpush.xpose.msra.mxu0 %v230
      %269 = vmatmul.f32.gmra.mxu0 %v225
      %v270 = vpop.f32.mrf.mxu0
      %v271 = vadd.f32 %v251, %v270
      %272 = vdwg.mxu0
      %v273 = vadd.f32 %v222, %v271
      %vm274 = vcmask 27648
      %275 = vst.msk [vmem:[#allocation3] sm:$0xf] %vm274, %v273
      %p276 = scmp.eq.s32.totalorder %s20, 1
      %p277 = pnand %p276, %p196
      %p278 = pneg %p277
      // Predicated region
      $region29: #{upsampler_forward.2} parent=23 // pred_check
        _
      $region30: #{upsampler_forward.2} parent=23 // pred_check_branch
        %280 = sbr.rel (%p277) target = $region32
      $region31: #{upsampler_forward.2} parent=23 // pred_region
        %v281 = vld [vmem:[#allocation2] sm:$0xf]
        %282 = vst.msk [vmem:[%s190] sm:$0xf] %vm220, %v281
        %v283 = vld [vmem:[#allocation3] sm:$0xf]
        %284 = vst.msk [vmem:[%s194] sm:$0xf] %vm274, %v283
      $region32: #{upsampler_forward.2} parent=23 // pred_fallthru
        _
      %p285 = scmp.lt.s32.totalorder %s19, 0
      %s286 = scalar_select %p285, %s19, 0
      %s287 = smul.addr %s286, 4
      %s288 = scalar_lea.vmem %s1, %s287
      %p289 = scmp.lt.s32.totalorder %s19, 0
      %s290 = scalar_select %p289, %s19, 0
      %s291 = smul.addr %s290, 4
      %s292 = scalar_lea.vmem %s2, %s291
      // Predicated region
      $region33: #{upsampler_forward.2} parent=23 // pred_check
        %p293 = pneg %p81
      $region34: #{upsampler_forward.2} parent=23 // pred_check_branch
        %295 = sbr.rel (%p293) target = $region36
      $region35: #{upsampler_forward.2} parent=23 // pred_region
        _
      $region36: #{upsampler_forward.2} parent=23 // pred_fallthru
        _
      // Predicated region
      $region37: #{upsampler_forward.2} parent=23 // pred_check
        %p296 = pneg %p107
      $region38: #{upsampler_forward.2} parent=23 // pred_check_branch
        %298 = sbr.rel (%p296) target = $region40
      $region39: #{upsampler_forward.2} parent=23 // pred_region
        _
      $region40: #{upsampler_forward.2} parent=23 // pred_fallthru
        _
      // Predicated region
      $region41: #{upsampler_forward.2} parent=23 // pred_check
        %p299 = pneg %p81
      $region42: #{upsampler_forward.2} parent=23 // pred_check_branch
        %301 = sbr.rel (%p299) target = $region44
      $region43: #{upsampler_forward.2} parent=23 // pred_region
        %p302 = scmp.lt.s32.totalorder %s19, 0
        %s303 = scalar_select %p302, %s19, 0
        %s304 = smul.addr %s303, 4
        %s305 = scalar_lea.vmem %s1, %s304
      $region44: #{upsampler_forward.2} parent=23 // pred_fallthru
        _
      // Predicated region
      $region45: #{upsampler_forward.2} parent=23 // pred_check
        %p306 = pneg %p107
      $region46: #{upsampler_forward.2} parent=23 // pred_check_branch
        %308 = sbr.rel (%p306) target = $region48
      $region47: #{upsampler_forward.2} parent=23 // pred_region
        %p309 = scmp.lt.s32.totalorder %s19, 0
        %s310 = scalar_select %p309, %s19, 0
        %s311 = smul.addr %s310, 4
        %s312 = scalar_lea.vmem %s2, %s311
      $region48: #{upsampler_forward.2} parent=23 // pred_fallthru
        _
    $region24: #{upsampler_forward.2} parent=5 // pred_fallthru
      _
    %p313 = scmp.le.s32.totalorder 2, %s9
    // Predicated region
    $region49: #{upsampler_forward.2} parent=5 // pred_check
      %p314 = pneg %p313
    $region50: #{upsampler_forward.2} parent=5 // pred_check_branch
      %316 = sbr.rel (%p314) target = $region52
    $region51: #{upsampler_forward.2} parent=5 // pred_region
      %s317 = ssub.s32 %s9, 2
    $region52: #{upsampler_forward.2} parent=5 // pred_fallthru
      _
  $region6: #{upsampler_forward.2} parent=0 // loop_footer
    %s13 = sadd.s32 1, %s9
  $region7: #{upsampler_forward.2} parent=0 // loop_footer_branch
    %8 = sbr.rel target = $region3
  $region8: #{upsampler_forward.2} parent=0 // loop_exit
    _

// kernel: upsampler_forward.3
$region0: #{upsampler_forward.3}
  #allocation0 [shape = 'u32[]', space=smem, size = 0x4, offset = 0x4, fixed_abs, tag = 'smem constant byte address 0x4 - core index']
  #allocation1 [shape = 'u32[72,128]{1,0:T(1,128)}', space=vmem, size = 0x9000, scoped, tag = 'internal scratch']
  %s0 = inlined_call_operand.vmem [shape: f32[32,64], index: 0, kind: input, shape index: {}]
  %s1 = inlined_call_operand.vmem [shape: f32[64,512], index: 1, kind: input, shape index: {}]
  %s2 = inlined_call_operand.vmem [shape: f32[1,512], index: 2, kind: input, shape index: {}]
  %s3 = inlined_call_operand.vmem [shape: f32[32,512], index: 3, kind: output, shape index: {}]
  %s4 = sld [smem:[#allocation0]]
  $region22: #{upsampler_forward.3} parent=0
    _
  %s6 = ssub.s32 1, %s4
  %s7 = scalar_select 0, %s6, %s4
  // Predicated region
  $region2: #{upsampler_forward.3} parent=0 // pred_check
    _
  $region3: #{upsampler_forward.3} parent=0 // pred_check_branch
    %9 = sbr.rel (0) target = $region5
  $region4: #{upsampler_forward.3} parent=0 // pred_region
    _
  $region5: #{upsampler_forward.3} parent=0 // pred_fallthru
    _
  // Predicated region
  $region6: #{upsampler_forward.3} parent=0 // pred_check
    _
  $region7: #{upsampler_forward.3} parent=0 // pred_check_branch
    %11 = sbr.rel (0) target = $region9
  $region8: #{upsampler_forward.3} parent=0 // pred_region
    _
  $region9: #{upsampler_forward.3} parent=0 // pred_fallthru
    _
  // Predicated region
  $region10: #{upsampler_forward.3} parent=0 // pred_check
    _
  $region11: #{upsampler_forward.3} parent=0 // pred_check_branch
    %13 = sbr.rel (0) target = $region13
  $region12: #{upsampler_forward.3} parent=0 // pred_region
    _
  $region13: #{upsampler_forward.3} parent=0 // pred_fallthru
    _
  %v14 = vld [vmem:[%s0] sm:$0xff]
  %v15 = vld [vmem:[%s0 + $0x8] sm:$0xff]
  %v16 = vld [vmem:[%s0 + $0x10] sm:$0xff]
  %v17 = vld [vmem:[%s0 + $0x18] sm:$0xff]
  %v18 = vld [vmem:[%s1] sm:$0xff]
  %v19 = vld [vmem:[%s1 + $0x8] sm:$0xff]
  %v20 = vld [vmem:[%s1 + $0x10] sm:$0xff]
  %v21 = vld [vmem:[%s1 + $0x18] sm:$0xff]
  %v22 = vld [vmem:[%s1 + $0x20] sm:$0xff]
  %v23 = vld [vmem:[%s1 + $0x28] sm:$0xff]
  %v24 = vld [vmem:[%s1 + $0x30] sm:$0xff]
  %v25 = vld [vmem:[%s1 + $0x38] sm:$0xff]
  %v26 = vld [vmem:[%s1 + $0x40] sm:$0xff]
  %v27 = vld [vmem:[%s1 + $0x48] sm:$0xff]
  %v28 = vld [vmem:[%s1 + $0x50] sm:$0xff]
  %v29 = vld [vmem:[%s1 + $0x58] sm:$0xff]
  %v30 = vld [vmem:[%s1 + $0x60] sm:$0xff]
  %v31 = vld [vmem:[%s1 + $0x68] sm:$0xff]
  %v32 = vld [vmem:[%s1 + $0x70] sm:$0xff]
  %v33 = vld [vmem:[%s1 + $0x78] sm:$0xff]
  %v34 = vld [vmem:[%s1 + $0x80] sm:$0xff]
  %v35 = vld [vmem:[%s1 + $0x88] sm:$0xff]
  %v36 = vld [vmem:[%s1 + $0x90] sm:$0xff]
  %v37 = vld [vmem:[%s1 + $0x98] sm:$0xff]
  %v38 = vld [vmem:[%s1 + $0xa0] sm:$0xff]
  %v39 = vld [vmem:[%s1 + $0xa8] sm:$0xff]
  %v40 = vld [vmem:[%s1 + $0xb0] sm:$0xff]
  %v41 = vld [vmem:[%s1 + $0xb8] sm:$0xff]
  %v42 = vld [vmem:[%s1 + $0xc0] sm:$0xff]
  %v43 = vld [vmem:[%s1 + $0xc8] sm:$0xff]
  %v44 = vld [vmem:[%s1 + $0xd0] sm:$0xff]
  %v45 = vld [vmem:[%s1 + $0xd8] sm:$0xff]
  %v46 = vld [vmem:[%s1 + $0xe0] sm:$0xff]
  %v47 = vld [vmem:[%s1 + $0xe8] sm:$0xff]
  %v48 = vld [vmem:[%s1 + $0xf0] sm:$0xff]
  %v49 = vld [vmem:[%s1 + $0xf8] sm:$0xff]
  %v50 = vld [vmem:[%s2] sm:$0xf]
  %v52 = vperm.slane %v50, 0
  %v53 = vperm.slane %v50, 1
  %v54 = vperm.slane %v50, 2
  %v55 = vperm.slane %v50, 3
  %vm60 = vcmask 523264
  %v62 = vsel %vm60, %v14, 0
  %v65 = vsel %vm60, %v15, 0
  %v68 = vsel %vm60, %v16, 0
  %v71 = vsel %vm60, %v17, 0
  %73 = vmatpush.msra.mxu0 0.0
  %74 = vmatpush.msra.mxu0 0.0
  %75 = vmatpush.msra.mxu0 0.0
  %76 = vmatpush.msra.mxu0 0.0
  %77 = vmatpush.msra.mxu0 0.0
  %78 = vmatpush.msra.mxu0 0.0
  %79 = vmatpush.msra.mxu0 0.0
  %80 = vmatpush.msra.mxu0 0.0
  %81 = vmatpush.msra.mxu0 %v46
  %82 = vmatpush.msra.mxu0 %v42
  %83 = vmatpush.msra.mxu0 %v38
  %84 = vmatpush.msra.mxu0 %v34
  %85 = vmatpush.msra.mxu0 %v30
  %86 = vmatpush.msra.mxu0 %v26
  %87 = vmatpush.msra.mxu0 %v22
  %88 = vmatpush.msra.mxu0 %v18
  %89 = vmatmul.f32.gmra.mxu0 %v62
  %v90 = vpop.f32.mrf.mxu0
  %v91 = vadd.f32 %v52, %v90
  %92 = vmatmul.f32.gmra.mxu0 %v65
  %v93 = vpop.f32.mrf.mxu0
  %v94 = vadd.f32 %v52, %v93
  %95 = vmatmul.f32.gmra.mxu0 %v68
  %v96 = vpop.f32.mrf.mxu0
  %v97 = vadd.f32 %v52, %v96
  %98 = vmatmul.f32.gmra.mxu0 %v71
  %v99 = vpop.f32.mrf.mxu0
  %v100 = vadd.f32 %v52, %v99
  %101 = vdwg.mxu0
  %102 = vmatpush.msra.mxu0 0.0
  %103 = vmatpush.msra.mxu0 0.0
  %104 = vmatpush.msra.mxu0 0.0
  %105 = vmatpush.msra.mxu0 0.0
  %106 = vmatpush.msra.mxu0 0.0
  %107 = vmatpush.msra.mxu0 0.0
  %108 = vmatpush.msra.mxu0 0.0
  %109 = vmatpush.msra.mxu0 0.0
  %110 = vmatpush.msra.mxu0 %v47
  %111 = vmatpush.msra.mxu0 %v43
  %112 = vmatpush.msra.mxu0 %v39
  %113 = vmatpush.msra.mxu0 %v35
  %114 = vmatpush.msra.mxu0 %v31
  %115 = vmatpush.msra.mxu0 %v27
  %116 = vmatpush.msra.mxu0 %v23
  %117 = vmatpush.msra.mxu0 %v19
  %118 = vmatmul.f32.gmra.mxu0 %v62
  %v119 = vpop.f32.mrf.mxu0
  %v120 = vadd.f32 %v53, %v119
  %121 = vmatmul.f32.gmra.mxu0 %v65
  %v122 = vpop.f32.mrf.mxu0
  %v123 = vadd.f32 %v53, %v122
  %124 = vmatmul.f32.gmra.mxu0 %v68
  %v125 = vpop.f32.mrf.mxu0
  %v126 = vadd.f32 %v53, %v125
  %127 = vmatmul.f32.gmra.mxu0 %v71
  %v128 = vpop.f32.mrf.mxu0
  %v129 = vadd.f32 %v53, %v128
  %130 = vdwg.mxu0
  %131 = vmatpush.msra.mxu0 0.0
  %132 = vmatpush.msra.mxu0 0.0
  %133 = vmatpush.msra.mxu0 0.0
  %134 = vmatpush.msra.mxu0 0.0
  %135 = vmatpush.msra.mxu0 0.0
  %136 = vmatpush.msra.mxu0 0.0
  %137 = vmatpush.msra.mxu0 0.0
  %138 = vmatpush.msra.mxu0 0.0
  %139 = vmatpush.msra.mxu0 %v48
  %140 = vmatpush.msra.mxu0 %v44
  %141 = vmatpush.msra.mxu0 %v40
  %142 = vmatpush.msra.mxu0 %v36
  %143 = vmatpush.msra.mxu0 %v32
  %144 = vmatpush.msra.mxu0 %v28
  %145 = vmatpush.msra.mxu0 %v24
  %146 = vmatpush.msra.mxu0 %v20
  %147 = vmatmul.f32.gmra.mxu0 %v62
  %v148 = vpop.f32.mrf.mxu0
  %v149 = vadd.f32 %v54, %v148
  %150 = vmatmul.f32.gmra.mxu0 %v65
  %v151 = vpop.f32.mrf.mxu0
  %v152 = vadd.f32 %v54, %v151
  %153 = vmatmul.f32.gmra.mxu0 %v68
  %v154 = vpop.f32.mrf.mxu0
  %v155 = vadd.f32 %v54, %v154
  %156 = vmatmul.f32.gmra.mxu0 %v71
  %v157 = vpop.f32.mrf.mxu0
  %v158 = vadd.f32 %v54, %v157
  %159 = vdwg.mxu0
  %160 = vmatpush.msra.mxu0 0.0
  %161 = vmatpush.msra.mxu0 0.0
  %162 = vmatpush.msra.mxu0 0.0
  %163 = vmatpush.msra.mxu0 0.0
  %164 = vmatpush.msra.mxu0 0.0
  %165 = vmatpush.msra.mxu0 0.0
  %166 = vmatpush.msra.mxu0 0.0
  %167 = vmatpush.msra.mxu0 0.0
  %168 = vmatpush.msra.mxu0 %v49
  %169 = vmatpush.msra.mxu0 %v45
  %170 = vmatpush.msra.mxu0 %v41
  %171 = vmatpush.msra.mxu0 %v37
  %172 = vmatpush.msra.mxu0 %v33
  %173 = vmatpush.msra.mxu0 %v29
  %174 = vmatpush.msra.mxu0 %v25
  %175 = vmatpush.msra.mxu0 %v21
  %176 = vmatmul.f32.gmra.mxu0 %v62
  %v177 = vpop.f32.mrf.mxu0
  %v178 = vadd.f32 %v55, %v177
  %179 = vmatmul.f32.gmra.mxu0 %v65
  %v180 = vpop.f32.mrf.mxu0
  %v181 = vadd.f32 %v55, %v180
  %182 = vmatmul.f32.gmra.mxu0 %v68
  %v183 = vpop.f32.mrf.mxu0
  %v184 = vadd.f32 %v55, %v183
  %185 = vmatmul.f32.gmra.mxu0 %v71
  %v186 = vpop.f32.mrf.mxu0
  %v187 = vadd.f32 %v55, %v186
  %188 = vdwg.mxu0
  %v189 = vmax.f32 %v91, 0.0
  %v190 = vmax.f32 %v120, 0.0
  %v191 = vmax.f32 %v149, 0.0
  %v192 = vmax.f32 %v178, 0.0
  %v193 = vmax.f32 %v94, 0.0
  %v194 = vmax.f32 %v123, 0.0
  %v195 = vmax.f32 %v152, 0.0
  %v196 = vmax.f32 %v181, 0.0
  %v197 = vmax.f32 %v97, 0.0
  %v198 = vmax.f32 %v126, 0.0
  %v199 = vmax.f32 %v155, 0.0
  %v200 = vmax.f32 %v184, 0.0
  %v201 = vmax.f32 %v100, 0.0
  %v202 = vmax.f32 %v129, 0.0
  %v203 = vmax.f32 %v158, 0.0
  %v204 = vmax.f32 %v187, 0.0
  %205 = vst [vmem:[%s3] sm:$0xff] %v189
  %206 = vst [vmem:[%s3 + $0x8] sm:$0xff] %v190
  %207 = vst [vmem:[%s3 + $0x10] sm:$0xff] %v191
  %208 = vst [vmem:[%s3 + $0x18] sm:$0xff] %v192
  %209 = vst [vmem:[%s3 + $0x20] sm:$0xff] %v193
  %210 = vst [vmem:[%s3 + $0x28] sm:$0xff] %v194
  %211 = vst [vmem:[%s3 + $0x30] sm:$0xff] %v195
  %212 = vst [vmem:[%s3 + $0x38] sm:$0xff] %v196
  %213 = vst [vmem:[%s3 + $0x40] sm:$0xff] %v197
  %214 = vst [vmem:[%s3 + $0x48] sm:$0xff] %v198
  %215 = vst [vmem:[%s3 + $0x50] sm:$0xff] %v199
  %216 = vst [vmem:[%s3 + $0x58] sm:$0xff] %v200
  %217 = vst [vmem:[%s3 + $0x60] sm:$0xff] %v201
  %218 = vst [vmem:[%s3 + $0x68] sm:$0xff] %v202
  %219 = vst [vmem:[%s3 + $0x70] sm:$0xff] %v203
  %220 = vst [vmem:[%s3 + $0x78] sm:$0xff] %v204
  // Predicated region
  $region14: #{upsampler_forward.3} parent=0 // pred_check
    _
  $region15: #{upsampler_forward.3} parent=0 // pred_check_branch
    %222 = sbr.rel (0) target = $region17
  $region16: #{upsampler_forward.3} parent=0 // pred_region
    _
  $region17: #{upsampler_forward.3} parent=0 // pred_fallthru
    _
  // Predicated region
  $region18: #{upsampler_forward.3} parent=0 // pred_check
    _
  $region19: #{upsampler_forward.3} parent=0 // pred_check_branch
    %224 = sbr.rel (0) target = $region21
  $region20: #{upsampler_forward.3} parent=0 // pred_region
    _
  $region21: #{upsampler_forward.3} parent=0 // pred_fallthru
    _

</llo_original>
